<compile_context>
chip_gen: v7x
topology: tpu7x:2x2x1
jax: 0.10.0
libtpu: 0.0.40
codegen_flags: <defaults>
</compile_context>

<pallas_src>
import jax
import jax.numpy as jnp
import numpy as np
from jax.experimental import pallas as pl
from jax.experimental.pallas import tpu as pltpu


def _cdiv(a, b):
    return -(-a // b)


def _round_up(a, b):
    return _cdiv(a, b) * b


def _reg_loss_kernel(pred_ref, tgt_ref, mask_ref, sum_ref, num_ref):
    """One grid step == one (D, T) slab of T objects (objects on the lane axis).

    pred_ref : (D, T)    gathered predictions (native dtype)
    tgt_ref  : (D, T)    regression targets   (native dtype)
    mask_ref : (1, T)    per-object valid mask (0 for padded objects)
    sum_ref  : (1, D, T) resident per-core accumulator of masked |pred - tgt|
    num_ref  : (1, 1, T) resident per-core accumulator of mask
    """
    i = pl.program_id(1)  # reduction axis (innermost, "arbitrary")

    @pl.when(i == 0)
    def _():
        sum_ref[...] = jnp.zeros_like(sum_ref)
        num_ref[...] = jnp.zeros_like(num_ref)

    pred = pred_ref[...].astype(jnp.float32)        # (D, T)
    tgt = tgt_ref[...].astype(jnp.float32)          # (D, T)
    m = mask_ref[...].astype(jnp.float32)           # (1, T)

    # mask = mask * isnotnan(target).  (x == x) is the NaN test; the
    # multiply-then-subtract form keeps the reference's IEEE NaN propagation.
    notnan = (tgt == tgt).astype(jnp.float32)       # (D, T)
    mm = m * notnan                                 # (D, T) via lane broadcast

    sum_ref[...] += jnp.abs(pred * mm - tgt * mm)[None]   # (1, D, T)
    num_ref[...] += m[None]                                # (1, 1, T)


def reg_loss_centernet(output, mask, ind=None, target=None,
                       *, tile=1024, num_cores=2):
    """Pallas equivalent of RegLossCenterNet.forward.

    output: (B, D, H, W) float (NCHW, like PyTorch) -- or (B, M, D) if ind is None
    mask  : (B, M) bool/float
    ind   : (B, M) int indices into the flattened H*W plane
    target: (B, M, D) float
    returns: (D,) per-dimension loss (float32)
    """
    B, M, D = target.shape
    N = B * M

    if ind is None:
        pred = output.reshape(B, M, D)
    else:
        _, Dc, H, W = output.shape
        assert Dc == D
        # Coalesced gather in XLA (instead of per-row DMAs inside the kernel):
        # NCHW -> NHWC -> (B, H*W, D), take_along_axis over the spatial dim
        # (each index fetches D contiguous values).
        # TODO(synk): the data-dependent spatial gather has no rectangular
        # BlockSpec equivalent; it stays in the wrapper as a single XLA gather.
        feat = jnp.transpose(output, (0, 2, 3, 1)).reshape(B, H * W, D)
        pred = jnp.take_along_axis(feat, ind[:, :, None].astype(jnp.int32), axis=1)

    # Lane-dense layout: objects on the 128-lane axis, regression dim on sublanes.
    # Keep native dtypes through the DMA; cast to f32 inside the kernel.
    pred_t = pred.reshape(N, D).T                             # (D, N)
    target_t = target.reshape(N, D).T                         # (D, N)
    mask_t = mask.astype(jnp.float32).reshape(1, N)           # (1, N)

    # Tile size: multiple of 128 lanes, up to `tile` objects per grid step.
    C = max(1, int(num_cores))
    T = min(_round_up(tile, 128), max(128, _round_up(_cdiv(N, C), 128)))
    nblk = _cdiv(N, T * C)            # blocks per core along the object axis
    n_pad = C * nblk * T

    if n_pad != N:
        pad = n_pad - N
        pred_t = jnp.pad(pred_t, ((0, 0), (0, pad)))
        target_t = jnp.pad(target_t, ((0, 0), (0, pad)))
        mask_t = jnp.pad(mask_t, ((0, 0), (0, pad)))          # padded mask == 0

    sum_out, num_out = pl.pallas_call(
        _reg_loss_kernel,
        out_shape=(jax.ShapeDtypeStruct((C, D, T), jnp.float32),
                   jax.ShapeDtypeStruct((C, 1, T), jnp.float32)),
        grid_spec=pltpu.PrefetchScalarGridSpec(
            num_scalar_prefetch=0,
            grid=(C, nblk),
            in_specs=[
                pl.BlockSpec((D, T), lambda c, i: (0, c * nblk + i)),
                pl.BlockSpec((D, T), lambda c, i: (0, c * nblk + i)),
                pl.BlockSpec((1, T), lambda c, i: (0, c * nblk + i)),
            ],
            out_specs=[
                pl.BlockSpec((1, D, T), lambda c, i: (c, 0, 0)),
                pl.BlockSpec((1, 1, T), lambda c, i: (c, 0, 0)),
            ],
        ),
        compiler_params=pltpu.CompilerParams(
            dimension_semantics=("parallel", "arbitrary")),
    )(pred_t, target_t, mask_t)

    # Tiny epilogue in the wrapper: collapse the wide per-core partials.
    num = jnp.maximum(jnp.sum(num_out), 1.0)
    loss = jnp.sum(sum_out, axis=(0, 2)) / num                # (D,)
    return loss


# ---------------- pure-JAX reference (mirrors the PyTorch code) ----------------
def _reg_loss_ref(regr, gt_regr, mask):
    num = mask.astype(jnp.float32).sum()
    maskf = mask.astype(jnp.float32)[..., None] * jnp.ones_like(gt_regr)
    isnotnan = (~jnp.isnan(gt_regr)).astype(jnp.float32)
    maskf = maskf * isnotnan
    regr = regr * maskf
    gt_regr = gt_regr * maskf
    loss = jnp.abs(regr - gt_regr)            # (B, M, D)
    loss = jnp.sum(loss, axis=(0, 1))         # transpose(2,0) + sum dim2 + sum dim1
    return loss / jnp.maximum(num, 1.0)


def _ref_full(output, mask, ind, target):
    B, _, H, W = output.shape
    feat = jnp.transpose(output, (0, 2, 3, 1)).reshape(B, H * W, -1)
    pred_ref = jnp.take_along_axis(feat, ind[:, :, None].astype(jnp.int32), axis=1)
    return _reg_loss_ref(pred_ref, target, mask)


if __name__ == "__main__":
    key = jax.random.PRNGKey(0)

    # --- case 1: small canonical shapes ---
    B, D, H, W, M = 2, 4, 16, 16, 8
    k1, k2, k3, k4 = jax.random.split(key, 4)
    output = jax.random.normal(k1, (B, D, H, W), dtype=jnp.float32)
    target = jax.random.normal(k2, (B, M, D), dtype=jnp.float32)
    ind = jax.random.randint(k3, (B, M), 0, H * W, dtype=jnp.int32)
    mask = (jax.random.uniform(k4, (B, M)) > 0.3).astype(jnp.float32)

    loss = jax.block_until_ready(
        reg_loss_centernet(output, mask, ind=ind, target=target))
    loss_ref = _ref_full(output, mask, ind, target)
    np.testing.assert_allclose(np.asarray(loss), np.asarray(loss_ref),
                               rtol=1e-5, atol=1e-5)

    # --- case 2: non-multiple object count (exercises lane padding) ---
    B2, D2, H2, W2, M2 = 2, 4, 16, 16, 37
    k5, k6, k7, k8 = jax.random.split(jax.random.PRNGKey(1), 4)
    output2 = jax.random.normal(k5, (B2, D2, H2, W2), dtype=jnp.float32)
    target2 = jax.random.normal(k6, (B2, M2, D2), dtype=jnp.float32)
    ind2 = jax.random.randint(k7, (B2, M2), 0, H2 * W2, dtype=jnp.int32)
    mask2 = (jax.random.uniform(k8, (B2, M2)) > 0.5).astype(jnp.float32)

    loss2 = jax.block_until_ready(
        reg_loss_centernet(output2, mask2, ind=ind2, target=target2))
    loss2_ref = _ref_full(output2, mask2, ind2, target2)
    np.testing.assert_allclose(np.asarray(loss2), np.asarray(loss2_ref),
                               rtol=1e-5, atol=1e-5)

    print("KERNEL_OK")
</pallas_src>

<mosaic_0001>
module attributes {stable_mosaic.version = 11 : i64} {
  func.func @_reg_loss_kernel(%arg0: i32, %arg1: i32, %arg2: memref<4x128xf32, #tpu.memory_space<vmem>>, %arg3: memref<4x128xf32, #tpu.memory_space<vmem>>, %arg4: memref<1x128xf32, #tpu.memory_space<vmem>>, %arg5: memref<1x4x128xf32, #tpu.memory_space<vmem>>, %arg6: memref<1x1x128xf32, #tpu.memory_space<vmem>>) attributes {dimension_semantics = [#tpu.dimension_semantics<parallel>, #tpu.dimension_semantics<arbitrary>], iteration_bounds = array<i64: 2, 1>, scalar_prefetch = 0 : i64, scratch_operands = 0 : i64, tpu.core_type = #tpu.core_type<tc>, window_params = [{transform_indices = @transform_0, window_bounds = array<i64: 4, 128>}, {transform_indices = @transform_1, window_bounds = array<i64: 4, 128>}, {transform_indices = @transform_2, window_bounds = array<i64: 1, 128>}, {transform_indices = @transform_3, window_bounds = array<i64: 1, 4, 128>}, {transform_indices = @transform_4, window_bounds = array<i64: 1, 1, 128>}]} {
    %c0_i32 = arith.constant 0 : i32
    %0 = arith.cmpi eq, %arg1, %c0_i32 : i32
    %1 = arith.extui %0 : i1 to i32
    %c0_i32_0 = arith.constant 0 : i32
    %2 = arith.cmpi ne, %1, %c0_i32_0 : i32
    scf.if %2 {
      %cst = arith.constant 0.000000e+00 : f32
      %23 = vector.broadcast %cst : f32 to vector<1x4x128xf32>
      %c0_18 = arith.constant 0 : index
      %c0_19 = arith.constant 0 : index
      %c0_20 = arith.constant 0 : index
      %24 = vector.load %arg5[%c0_18, %c0_19, %c0_20] : memref<1x4x128xf32, #tpu.memory_space<vmem>>, vector<1x4x128xf32>
      tpu.vector_store %arg5[%c0_18, %c0_19, %c0_20], %23 {strides = array<i32>} : memref<1x4x128xf32, #tpu.memory_space<vmem>>, vector<1x4x128xf32>,
      %cst_21 = arith.constant 0.000000e+00 : f32
      %25 = vector.broadcast %cst_21 : f32 to vector<1x1x128xf32>
      %c0_22 = arith.constant 0 : index
      %c0_23 = arith.constant 0 : index
      %c0_24 = arith.constant 0 : index
      %26 = vector.load %arg6[%c0_22, %c0_23, %c0_24] : memref<1x1x128xf32, #tpu.memory_space<vmem>>, vector<1x1x128xf32>
      tpu.vector_store %arg6[%c0_22, %c0_23, %c0_24], %25 {strides = array<i32>} : memref<1x1x128xf32, #tpu.memory_space<vmem>>, vector<1x1x128xf32>,
    } else {
    }
    %c0 = arith.constant 0 : index
    %c0_1 = arith.constant 0 : index
    %3 = vector.load %arg2[%c0, %c0_1] : memref<4x128xf32, #tpu.memory_space<vmem>>, vector<4x128xf32>
    %c0_2 = arith.constant 0 : index
    %c0_3 = arith.constant 0 : index
    %4 = vector.load %arg3[%c0_2, %c0_3] : memref<4x128xf32, #tpu.memory_space<vmem>>, vector<4x128xf32>
    %c0_4 = arith.constant 0 : index
    %c0_5 = arith.constant 0 : index
    %5 = vector.load %arg4[%c0_4, %c0_5] : memref<1x128xf32, #tpu.memory_space<vmem>>, vector<1x128xf32>
    %6 = arith.cmpf oeq, %4, %4 : vector<4x128xf32>
    %7 = arith.extui %6 : vector<4x128xi1> to vector<4x128xi32>
    %8 = arith.sitofp %7 : vector<4x128xi32> to vector<4x128xf32>
    %9 = vector.broadcast %5 : vector<1x128xf32> to vector<4x128xf32>
    %10 = arith.mulf %9, %8 : vector<4x128xf32>
    %c0_6 = arith.constant 0 : index
    %c0_7 = arith.constant 0 : index
    %c0_8 = arith.constant 0 : index
    %11 = vector.load %arg5[%c0_6, %c0_7, %c0_8] : memref<1x4x128xf32, #tpu.memory_space<vmem>>, vector<1x4x128xf32>
    %12 = arith.mulf %3, %10 : vector<4x128xf32>
    %13 = arith.mulf %4, %10 : vector<4x128xf32>
    %14 = arith.subf %12, %13 : vector<4x128xf32>
    %15 = math.absf %14 : vector<4x128xf32>
    %16 = vector.shape_cast %15 : vector<4x128xf32> to vector<1x4x128xf32>
    %17 = arith.addf %11, %16 : vector<1x4x128xf32>
    %c0_9 = arith.constant 0 : index
    %c0_10 = arith.constant 0 : index
    %c0_11 = arith.constant 0 : index
    %18 = vector.load %arg5[%c0_9, %c0_10, %c0_11] : memref<1x4x128xf32, #tpu.memory_space<vmem>>, vector<1x4x128xf32>
    tpu.vector_store %arg5[%c0_9, %c0_10, %c0_11], %17 {strides = array<i32>} : memref<1x4x128xf32, #tpu.memory_space<vmem>>, vector<1x4x128xf32>,
    %c0_12 = arith.constant 0 : index
    %c0_13 = arith.constant 0 : index
    %c0_14 = arith.constant 0 : index
    %19 = vector.load %arg6[%c0_12, %c0_13, %c0_14] : memref<1x1x128xf32, #tpu.memory_space<vmem>>, vector<1x1x128xf32>
    %20 = vector.shape_cast %5 : vector<1x128xf32> to vector<1x1x128xf32>
    %21 = arith.addf %19, %20 : vector<1x1x128xf32>
    %c0_15 = arith.constant 0 : index
    %c0_16 = arith.constant 0 : index
    %c0_17 = arith.constant 0 : index
    %22 = vector.load %arg6[%c0_15, %c0_16, %c0_17] : memref<1x1x128xf32, #tpu.memory_space<vmem>>, vector<1x1x128xf32>
    tpu.vector_store %arg6[%c0_15, %c0_16, %c0_17], %21 {strides = array<i32>} : memref<1x1x128xf32, #tpu.memory_space<vmem>>, vector<1x1x128xf32>,
    return
  }
  func.func @transform_0(%arg0: i32, %arg1: i32) -> (i32, i32) {
    %c1_i32 = arith.constant 1 : i32
    %0 = arith.muli %arg0, %c1_i32 : i32
    %1 = arith.addi %0, %arg1 : i32
    %c0_i32 = arith.constant 0 : i32
    %c0_i32_0 = arith.constant 0 : i32
    return %c0_i32, %1 : i32, i32
  }
  func.func @transform_1(%arg0: i32, %arg1: i32) -> (i32, i32) {
    %c1_i32 = arith.constant 1 : i32
    %0 = arith.muli %arg0, %c1_i32 : i32
    %1 = arith.addi %0, %arg1 : i32
    %c0_i32 = arith.constant 0 : i32
    %c0_i32_0 = arith.constant 0 : i32
    return %c0_i32, %1 : i32, i32
  }
  func.func @transform_2(%arg0: i32, %arg1: i32) -> (i32, i32) {
    %c1_i32 = arith.constant 1 : i32
    %0 = arith.muli %arg0, %c1_i32 : i32
    %1 = arith.addi %0, %arg1 : i32
    %c0_i32 = arith.constant 0 : i32
    %c0_i32_0 = arith.constant 0 : i32
    return %c0_i32, %1 : i32, i32
  }
  func.func @transform_3(%arg0: i32, %arg1: i32) -> (i32, i32, i32) {
    %c0_i32 = arith.constant 0 : i32
    %c0_i32_0 = arith.constant 0 : i32
    %c0_i32_1 = arith.constant 0 : i32
    return %arg0, %c0_i32, %c0_i32_0 : i32, i32, i32
  }
  func.func @transform_4(%arg0: i32, %arg1: i32) -> (i32, i32, i32) {
    %c0_i32 = arith.constant 0 : i32
    %c0_i32_0 = arith.constant 0 : i32
    %c0_i32_1 = arith.constant 0 : i32
    return %arg0, %c0_i32, %c0_i32_0 : i32, i32, i32
  }
}

</mosaic_0001>

<llo_original>
// kernel: tpu_custom_call.1
$region0: #{tpu_custom_call.1}
  #allocation0 [shape = 'u32[]', space=smem, size = 0x4, offset = 0x4, fixed_abs, tag = 'smem constant byte address 0x4 - core index']
  #allocation1 [shape = 'u32[144,128]{1,0:T(1,128)}', space=vmem, size = 0x12000, scoped, tag = 'internal scratch']
  %s0 = inlined_call_operand.hbm [shape: f32[4,256], index: 0, kind: input, shape index: {}]
  %s1 = inlined_call_operand.hbm [shape: f32[4,256], index: 1, kind: input, shape index: {}]
  %s2 = inlined_call_operand.vmem [shape: f32[1,256], index: 2, kind: input, shape index: {}]
  %s3 = inlined_call_operand.hbm [shape: f32[2,4,128], index: 3, kind: output, shape index: {0}]
  %s4 = inlined_call_operand.hbm [shape: f32[2,1,128], index: 4, kind: output, shape index: {1}]
  %5 = xla_tuple %s3, %s4
  %s6 = sld [smem:[#allocation0]]
  $region65: #{tpu_custom_call.1} parent=0
    _
  %s8 = ssub.s32 1, %s6
  %s9 = scalar_select 0, %s8, %s6
  $region1: #{tpu_custom_call.1} parent=0
    #allocation2 [shape = 'u8[4096]{0}', space=vmem, size = 0x1000, scoped, tag = 'input window, operand 0']
    #allocation3 [shape = 's32[2]{0}', space=sflag, size = 0x8, scoped, tag = 'scoped memory for tpu_custom_call.1']
    #allocation4 [shape = 's32[2]{0}', space=sflag, size = 0x8, scoped, tag = 'scoped memory for tpu_custom_call.1']
    #allocation5 [shape = 'u8[4096]{0}', space=vmem, size = 0x1000, scoped, tag = 'input window, operand 1']
    #allocation6 [shape = 's32[2]{0}', space=sflag, size = 0x8, scoped, tag = 'scoped memory for tpu_custom_call.1']
    #allocation7 [shape = 'u8[4096]{0}', space=vmem, size = 0x1000, scoped, tag = 'output window, operand 0']
    #allocation8 [shape = 'u8[1024]{0}', space=vmem, size = 0x400, scoped, tag = 'output window, operand 1']
    #allocation9 [shape = 's32[2]{0}', space=sflag, size = 0x8, scoped, tag = 'scoped memory for tpu_custom_call.1']
    %10 = vsyncpa [#allocation3], 0
    %s11 = scalar_lea.sflag [#allocation3], 1
    %12 = vsyncpa %s11, 0
    %13 = vsyncpa [#allocation6], 0
    %s14 = scalar_lea.sflag [#allocation6], 1
    %15 = vsyncpa %s14, 0
    %16 = vsyncpa [#allocation4], 0
    %s17 = scalar_lea.sflag [#allocation4], 1
    %18 = vsyncpa %s17, 0
    %19 = vsyncpa [#allocation9], 0
    %s20 = scalar_lea.sflag [#allocation9], 1
    %21 = vsyncpa %s20, 0
    loop: start=0, step=1, limit=4
    $region2: #{tpu_custom_call.1} parent=1 // loop_pre_header
      _
    $region3: #{tpu_custom_call.1} parent=1 // loop_header
      %s23 = sphi 0, %s27
      %p24 = scmp.ge.s32.totalorder %s23, 4
      %s30 = sphi 0, %s42
      %s31 = sphi 0, %s38
      %s32 = sphi 0, %s30
      %s33 = sphi 0, %s31
      %s34 = sphi 0, %s32
      %s35 = sphi 0, %s33
      %s47 = sphi 0, %s49
      %s50 = sphi 0, %s47
      %s51 = sphi 0, %s50
      %s67 = sphi 0, %s51
      %s75 = sphi 0, %s77
      %s78 = sphi 0, %s75
      %s79 = sphi 0, %s78
      %s95 = sphi 0, %s79
      %s103 = sphi 0, %s105
      %s106 = sphi 0, %s103
      %s107 = sphi 0, %s106
      %s123 = sphi 0, %s107
      %s129 = sphi 0, %s131
      %s132 = sphi 0, %s129
      %s133 = sphi 0, %s132
      %s149 = sphi 0, %s133
      %s155 = sphi 0, %s157
      %s158 = sphi 0, %s155
      %s159 = sphi 0, %s158
      %s175 = sphi 0, %s159
    $region4: #{tpu_custom_call.1} parent=1 // loop_header_branch
      %26 = sbr.rel (%p24) target = $region8
    $region5: #{tpu_custom_call.1} parent=1 // loop_body
      %s28 = ssub.s32 %s23, 1
      %s29 = ssub.s32 %s23, 2
      %s36 = sadd.s32 1, %s31
      %p37 = scmp.ge.s32.totalorder %s36, 1
      %s38 = scalar_select %p37, 0, %s36
      %s39 = sadd.s32 1, %s30
      %s40 = scalar_select %p37, %s39, %s30
      %p41 = scmp.ge.s32.totalorder %s40, 2
      %s42 = scalar_select %p41, 0, %s40
      %s43 = sadd.s32 %s30, %s31
      %s44 = sadd.s32 %s42, %s38
      %s45 = ssub.s32 %s43, %s44
      %p46 = scmp.eq.s32.totalorder %s45, 0
      %s48 = sadd.s32 %s47, 1
      %s49 = scalar_select %p46, %s47, %s48
      %p52 = pneg %p46
      %p53 = scmp.eq.s32.totalorder %s23, 1
      %p54 = por %p52, %p53
      %p55 = scmp.ne.s32.totalorder %s47, %s50
      %p56 = scmp.eq.s32.totalorder %s23, 0
      %p57 = por %p55, %p56
      %p58 = scmp.ne.s32.totalorder %s47, %s50
      %p59 = scmp.eq.s32.totalorder %s28, 1
      %p60 = por %p58, %p59
      %p61 = scmp.ne.s32.totalorder %s50, %s51
      %p62 = scmp.eq.s32.totalorder %s28, 0
      %p63 = por %p61, %p62
      %p64 = scmp.ne.s32.totalorder %s50, %s51
      %p65 = scmp.eq.s32.totalorder %s29, 1
      %p66 = por %p64, %p65
      %p68 = scmp.ne.s32.totalorder %s51, %s67
      %p69 = scmp.eq.s32.totalorder %s29, 0
      %p70 = por %p68, %p69
      %s71 = sadd.s32 %s30, %s31
      %s72 = sadd.s32 %s42, %s38
      %s73 = ssub.s32 %s71, %s72
      %p74 = scmp.eq.s32.totalorder %s73, 0
      %s76 = sadd.s32 %s75, 1
      %s77 = scalar_select %p74, %s75, %s76
      %p80 = pneg %p74
      %p81 = scmp.eq.s32.totalorder %s23, 1
      %p82 = por %p80, %p81
      %p83 = scmp.ne.s32.totalorder %s75, %s78
      %p84 = scmp.eq.s32.totalorder %s23, 0
      %p85 = por %p83, %p84
      %p86 = scmp.ne.s32.totalorder %s75, %s78
      %p87 = scmp.eq.s32.totalorder %s28, 1
      %p88 = por %p86, %p87
      %p89 = scmp.ne.s32.totalorder %s78, %s79
      %p90 = scmp.eq.s32.totalorder %s28, 0
      %p91 = por %p89, %p90
      %p92 = scmp.ne.s32.totalorder %s78, %s79
      %p93 = scmp.eq.s32.totalorder %s29, 1
      %p94 = por %p92, %p93
      %p96 = scmp.ne.s32.totalorder %s79, %s95
      %p97 = scmp.eq.s32.totalorder %s29, 0
      %p98 = por %p96, %p97
      %s99 = sadd.s32 %s30, %s31
      %s100 = sadd.s32 %s42, %s38
      %s101 = ssub.s32 %s99, %s100
      %p102 = scmp.eq.s32.totalorder %s101, 0
      %s104 = sadd.s32 %s103, 1
      %s105 = scalar_select %p102, %s103, %s104
      %p108 = pneg %p102
      %p109 = scmp.eq.s32.totalorder %s23, 1
      %p110 = por %p108, %p109
      %p111 = scmp.ne.s32.totalorder %s103, %s106
      %p112 = scmp.eq.s32.totalorder %s23, 0
      %p113 = por %p111, %p112
      %p114 = scmp.ne.s32.totalorder %s103, %s106
      %p115 = scmp.eq.s32.totalorder %s28, 1
      %p116 = por %p114, %p115
      %p117 = scmp.ne.s32.totalorder %s106, %s107
      %p118 = scmp.eq.s32.totalorder %s28, 0
      %p119 = por %p117, %p118
      %p120 = scmp.ne.s32.totalorder %s106, %s107
      %p121 = scmp.eq.s32.totalorder %s29, 1
      %p122 = por %p120, %p121
      %p124 = scmp.ne.s32.totalorder %s107, %s123
      %p125 = scmp.eq.s32.totalorder %s29, 0
      %p126 = por %p124, %p125
      %s127 = ssub.s32 %s30, %s42
      %p128 = scmp.eq.s32.totalorder %s127, 0
      %s130 = sadd.s32 %s129, 1
      %s131 = scalar_select %p128, %s129, %s130
      %p134 = pneg %p128
      %p135 = scmp.eq.s32.totalorder %s23, 1
      %p136 = por %p134, %p135
      %p137 = scmp.ne.s32.totalorder %s129, %s132
      %p138 = scmp.eq.s32.totalorder %s23, 0
      %p139 = por %p137, %p138
      %p140 = scmp.ne.s32.totalorder %s129, %s132
      %p141 = scmp.eq.s32.totalorder %s28, 1
      %p142 = por %p140, %p141
      %p143 = scmp.ne.s32.totalorder %s132, %s133
      %p144 = scmp.eq.s32.totalorder %s28, 0
      %p145 = por %p143, %p144
      %p146 = scmp.ne.s32.totalorder %s132, %s133
      %p147 = scmp.eq.s32.totalorder %s29, 1
      %p148 = por %p146, %p147
      %p150 = scmp.ne.s32.totalorder %s133, %s149
      %p151 = scmp.eq.s32.totalorder %s29, 0
      %p152 = por %p150, %p151
      %s153 = ssub.s32 %s30, %s42
      %p154 = scmp.eq.s32.totalorder %s153, 0
      %s156 = sadd.s32 %s155, 1
      %s157 = scalar_select %p154, %s155, %s156
      %p160 = pneg %p154
      %p161 = scmp.eq.s32.totalorder %s23, 1
      %p162 = por %p160, %p161
      %p163 = scmp.ne.s32.totalorder %s155, %s158
      %p164 = scmp.eq.s32.totalorder %s23, 0
      %p165 = por %p163, %p164
      %p166 = scmp.ne.s32.totalorder %s155, %s158
      %p167 = scmp.eq.s32.totalorder %s28, 1
      %p168 = por %p166, %p167
      %p169 = scmp.ne.s32.totalorder %s158, %s159
      %p170 = scmp.eq.s32.totalorder %s28, 0
      %p171 = por %p169, %p170
      %p172 = scmp.ne.s32.totalorder %s158, %s159
      %p173 = scmp.eq.s32.totalorder %s29, 1
      %p174 = por %p172, %p173
      %p176 = scmp.ne.s32.totalorder %s159, %s175
      %p177 = scmp.eq.s32.totalorder %s29, 0
      %p178 = por %p176, %p177
      %p179 = scmp.le.s32.totalorder 1, %s23
      %p180 = scmp.lt.s32.totalorder %s23, 3
      %p181 = pnand %p179, %p180
      %p182 = pneg %p181
      // Predicated region
      $region9: #{tpu_custom_call.1} parent=5 // pred_check
        _
      $region10: #{tpu_custom_call.1} parent=5 // pred_check_branch
        %184 = sbr.rel (%p181) target = $region12
      $region11: #{tpu_custom_call.1} parent=5 // pred_region
        %s185 = ssub.s32 %s23, 1
      $region12: #{tpu_custom_call.1} parent=5 // pred_fallthru
        _
      %p186 = scmp.lt.s32.totalorder %s23, 2
      // Predicated region
      $region13: #{tpu_custom_call.1} parent=5 // pred_check
        %p187 = pneg %p186
      $region14: #{tpu_custom_call.1} parent=5 // pred_check_branch
        %189 = sbr.rel (%p187) target = $region16
      $region15: #{tpu_custom_call.1} parent=5 // pred_region
        // Predicated region
        $region17: #{tpu_custom_call.1} parent=15 // pred_check
          %p190 = pneg %p57
        $region18: #{tpu_custom_call.1} parent=15 // pred_check_branch
          %192 = sbr.rel (%p190) target = $region20
        $region19: #{tpu_custom_call.1} parent=15 // pred_region
          %s193 = sand.u32 %s47, 1
          %s194 = scalar_lea.sflag [#allocation3], %s193
          %s195 = sand.u32 %s47, 1
          %s196 = smul.addr %s195, 4
          %s197 = scalar_lea.vmem [#allocation2], %s196
          %s198 = sadd.s32 %s30, %s31
          %s200 = ssub.s32 64, 64
          %201 = vsyncadd %s194, %s200
          %s202 = smul.addr %s198, 64
          %s203 = scalar_lea.hbm %s0, %s202
          %s205 = sshll.u32 %s197, 4
          %s206 = int_to_ptr.vmem [resolvable:$true] %s205
          %208 = dma.hbm_to_vmem [thread:$0]  %s203, 64, %s206, %s194
        $region20: #{tpu_custom_call.1} parent=15 // pred_fallthru
          _
        // Predicated region
        $region21: #{tpu_custom_call.1} parent=15 // pred_check
          %p209 = pneg %p85
        $region22: #{tpu_custom_call.1} parent=15 // pred_check_branch
          %211 = sbr.rel (%p209) target = $region24
        $region23: #{tpu_custom_call.1} parent=15 // pred_region
          %s212 = sand.u32 %s75, 1
          %s213 = scalar_lea.sflag [#allocation6], %s212
          %s214 = sand.u32 %s75, 1
          %s215 = smul.addr %s214, 4
          %s216 = scalar_lea.vmem [#allocation5], %s215
          %s217 = sadd.s32 %s30, %s31
          %s219 = ssub.s32 64, 64
          %220 = vsyncadd %s213, %s219
          %s221 = smul.addr %s217, 64
          %s222 = scalar_lea.hbm %s1, %s221
          %s224 = sshll.u32 %s216, 4
          %s225 = int_to_ptr.vmem [resolvable:$true] %s224
          %227 = dma.hbm_to_vmem [thread:$0]  %s222, 64, %s225, %s213
        $region24: #{tpu_custom_call.1} parent=15 // pred_fallthru
          _
        // Predicated region
        $region25: #{tpu_custom_call.1} parent=15 // pred_check
          %p228 = pneg %p113
        $region26: #{tpu_custom_call.1} parent=15 // pred_check_branch
          %230 = sbr.rel (%p228) target = $region28
        $region27: #{tpu_custom_call.1} parent=15 // pred_region
          %s231 = sadd.s32 %s30, %s31
          %p232 = scmp.lt.s32.totalorder %s231, 1
          %s233 = scalar_select %p232, %s231, 1
          %s234 = scalar_lea.vmem %s2, %s233
          %s235 = sadd.s32 %s30, %s31
        $region28: #{tpu_custom_call.1} parent=15 // pred_fallthru
          _
      $region16: #{tpu_custom_call.1} parent=5 // pred_fallthru
        _
      %p236 = scmp.le.s32.totalorder 1, %s23
      %p237 = scmp.lt.s32.totalorder %s23, 3
      %p238 = pnand %p236, %p237
      %p239 = pneg %p238
      // Predicated region
      $region29: #{tpu_custom_call.1} parent=5 // pred_check
        _
      $region30: #{tpu_custom_call.1} parent=5 // pred_check_branch
        %241 = sbr.rel (%p238) target = $region32
      $region31: #{tpu_custom_call.1} parent=5 // pred_region
        %s242 = ssub.s32 %s23, 1
        %s243 = sand.u32 %s50, 1
        %s244 = scalar_lea.sflag [#allocation3], %s243
        %s245 = sand.u32 %s50, 1
        %s246 = smul.addr %s245, 4
        %s247 = scalar_lea.vmem [#allocation2], %s246
        // Predicated region
        $region33: #{tpu_custom_call.1} parent=31 // pred_check
          %p248 = pneg %p63
        $region34: #{tpu_custom_call.1} parent=31 // pred_check_branch
          %250 = sbr.rel (%p248) target = $region36
        $region35: #{tpu_custom_call.1} parent=31 // pred_region
          %251 = dma.done %s244, 64
        $region36: #{tpu_custom_call.1} parent=31 // pred_fallthru
          _
        %s252 = sand.u32 %s78, 1
        %s253 = scalar_lea.sflag [#allocation6], %s252
        %s254 = sand.u32 %s78, 1
        %s255 = smul.addr %s254, 4
        %s256 = scalar_lea.vmem [#allocation5], %s255
        // Predicated region
        $region37: #{tpu_custom_call.1} parent=31 // pred_check
          %p257 = pneg %p91
        $region38: #{tpu_custom_call.1} parent=31 // pred_check_branch
          %259 = sbr.rel (%p257) target = $region40
        $region39: #{tpu_custom_call.1} parent=31 // pred_region
          %260 = dma.done %s253, 64
        $region40: #{tpu_custom_call.1} parent=31 // pred_fallthru
          _
        %s261 = sand.u32 %s50, 1
        %s262 = scalar_lea.sflag [#allocation3], %s261
        %s263 = sand.u32 %s50, 1
        %s264 = smul.addr %s263, 4
        %s265 = scalar_lea.vmem [#allocation2], %s264
        %p266 = pneg %p63
        %p267 = pneg %p60
        %s268 = sand.u32 %s78, 1
        %s269 = scalar_lea.sflag [#allocation6], %s268
        %s270 = sand.u32 %s78, 1
        %s271 = smul.addr %s270, 4
        %s272 = scalar_lea.vmem [#allocation5], %s271
        %p273 = pneg %p91
        %p274 = pneg %p88
        %s275 = sadd.s32 %s32, %s33
        %p276 = scmp.lt.s32.totalorder %s275, 1
        %s277 = scalar_select %p276, %s275, 1
        %s278 = scalar_lea.vmem %s2, %s277
        %p279 = pneg %p119
        %p280 = pneg %p116
        %p281 = pneg %p145
        %p282 = pneg %p142
        %s283 = sand.u32 %s132, 1
        %s284 = scalar_lea.sflag [#allocation4], %s283
        %s285 = sand.u32 %s132, 1
        %s286 = smul.addr %s285, 4
        %s287 = scalar_lea.vmem [#allocation7], %s286
        %p288 = pneg %p171
        %p289 = pneg %p168
        %s290 = sand.u32 %s158, 1
        %s291 = scalar_lea.sflag [#allocation9], %s290
        %s292 = sand.u32 %s158, 1
        %s293 = scalar_lea.vmem [#allocation8], %s292
        %s294 = sadd.s32 %s32, %s33
        %s295 = sadd.s32 %s32, %s33
        %s296 = sadd.s32 %s32, %s33
        %p297 = scmp.lt.s32.totalorder %s296, 1
        %s298 = scalar_select %p297, %s296, 1
        %s299 = scalar_lea.vmem %s2, %s298
        %s300 = sadd.s32 %s32, %s33
        %p301 = scmp.eq.s32.totalorder %s33, 0
        // Predicated region
        $region41: #{tpu_custom_call.1} parent=31 // pred_check
          %p302 = pneg %p301
        $region42: #{tpu_custom_call.1} parent=31 // pred_check_branch
          %304 = sbr.rel (%p302) target = $region44
        $region43: #{tpu_custom_call.1} parent=31 // pred_region
          %305 = vst [vmem:[%s287] sm:$0xf] 0.0
          %306 = vst [vmem:[%s293] sm:$0x1] 0.0
        $region44: #{tpu_custom_call.1} parent=31 // pred_fallthru
          _
        %v307 = vld [vmem:[%s247] sm:$0xf]
        %v308 = vld [vmem:[%s256] sm:$0xf]
        %v309 = vld [vmem:[%s299] sm:$0x1]
        %vm310 = vcmp.eq.f32.partialorder %v308, %v308
        %v311 = vsel %vm310, 1, 0
        %v312 = vcvt.s32.f32 %v311
        %v314 = vlaneseq
        %v315 = vshrl.u32 %v314, 7
        %v316 = vsub.s32 0, %v315
        %v317 = vrot.slane %v309, %v316
        %v319 = vmul.f32 %v317, %v312
        %v320 = vld [vmem:[%s287] sm:$0xf]
        %v321 = vmul.f32 %v307, %v319
        %v322 = vmul.f32 %v308, %v319
        %v323 = vsub.f32 %v321, %v322
        %v324 = vand.u32 2147483647, %v323
        %v325 = vadd.f32 %v320, %v324
        %326 = vst [vmem:[%s287] sm:$0xf] %v325
        %v327 = vld [vmem:[%s293] sm:$0x1]
        %v328 = vadd.f32 %v327, %v309
        %329 = vst [vmem:[%s293] sm:$0x1] %v328
        %s330 = sand.u32 %s132, 1
        %s331 = scalar_lea.sflag [#allocation4], %s330
        %s332 = sand.u32 %s132, 1
        %s333 = smul.addr %s332, 4
        %s334 = scalar_lea.vmem [#allocation7], %s333
        %s335 = sand.u32 %s158, 1
        %s336 = scalar_lea.sflag [#allocation9], %s335
        %s337 = sand.u32 %s158, 1
        %s338 = scalar_lea.vmem [#allocation8], %s337
        // Predicated region
        $region45: #{tpu_custom_call.1} parent=31 // pred_check
          %p339 = pneg %p142
        $region46: #{tpu_custom_call.1} parent=31 // pred_check_branch
          %341 = sbr.rel (%p339) target = $region48
        $region47: #{tpu_custom_call.1} parent=31 // pred_region
          %s343 = ssub.s32 64, 64
          %344 = vsyncadd %s331, %s343
          %s345 = smul.addr %s32, 64
          %s346 = scalar_lea.hbm %s3, %s345
          %s348 = sshll.u32 %s334, 4
          %s349 = int_to_ptr.vmem [resolvable:$true] %s348
          %351 = dma.vmem_to_hbm [thread:$0]  %s349, 64, %s346, %s331
        $region48: #{tpu_custom_call.1} parent=31 // pred_fallthru
          _
        // Predicated region
        $region49: #{tpu_custom_call.1} parent=31 // pred_check
          %p352 = pneg %p168
        $region50: #{tpu_custom_call.1} parent=31 // pred_check_branch
          %354 = sbr.rel (%p352) target = $region52
        $region51: #{tpu_custom_call.1} parent=31 // pred_region
          %s356 = ssub.s32 16, 16
          %357 = vsyncadd %s336, %s356
          %s358 = smul.addr %s32, 16
          %s359 = scalar_lea.hbm %s4, %s358
          %s361 = sshll.u32 %s338, 4
          %s362 = int_to_ptr.vmem [resolvable:$true] %s361
          %364 = dma.vmem_to_hbm [thread:$0]  %s362, 16, %s359, %s336
        $region52: #{tpu_custom_call.1} parent=31 // pred_fallthru
          _
      $region32: #{tpu_custom_call.1} parent=5 // pred_fallthru
        _
      %p365 = scmp.le.s32.totalorder 2, %s23
      // Predicated region
      $region53: #{tpu_custom_call.1} parent=5 // pred_check
        %p366 = pneg %p365
      $region54: #{tpu_custom_call.1} parent=5 // pred_check_branch
        %368 = sbr.rel (%p366) target = $region56
      $region55: #{tpu_custom_call.1} parent=5 // pred_region
        %s369 = ssub.s32 %s23, 2
        // Predicated region
        $region57: #{tpu_custom_call.1} parent=55 // pred_check
          %p370 = pneg %p148
        $region58: #{tpu_custom_call.1} parent=55 // pred_check_branch
          %372 = sbr.rel (%p370) target = $region60
        $region59: #{tpu_custom_call.1} parent=55 // pred_region
          %s373 = sand.u32 %s133, 1
          %s374 = scalar_lea.sflag [#allocation4], %s373
          %s375 = sand.u32 %s133, 1
          %s376 = smul.addr %s375, 4
          %s377 = scalar_lea.vmem [#allocation7], %s376
          %378 = dma.done %s374, 64
        $region60: #{tpu_custom_call.1} parent=55 // pred_fallthru
          _
        // Predicated region
        $region61: #{tpu_custom_call.1} parent=55 // pred_check
          %p379 = pneg %p174
        $region62: #{tpu_custom_call.1} parent=55 // pred_check_branch
          %381 = sbr.rel (%p379) target = $region64
        $region63: #{tpu_custom_call.1} parent=55 // pred_region
          %s382 = sand.u32 %s159, 1
          %s383 = scalar_lea.sflag [#allocation9], %s382
          %s384 = sand.u32 %s159, 1
          %s385 = scalar_lea.vmem [#allocation8], %s384
          %386 = dma.done %s383, 16
        $region64: #{tpu_custom_call.1} parent=55 // pred_fallthru
          _
      $region56: #{tpu_custom_call.1} parent=5 // pred_fallthru
        _
    $region6: #{tpu_custom_call.1} parent=1 // loop_footer
      %s27 = sadd.s32 1, %s23
    $region7: #{tpu_custom_call.1} parent=1 // loop_footer_branch
      %22 = sbr.rel target = $region3
    $region8: #{tpu_custom_call.1} parent=1 // loop_exit
      _
    %387 = vsyncpa [#allocation3], 1
    %s388 = scalar_lea.sflag [#allocation3], 1
    %389 = vsyncpa %s388, 1
    %390 = vsyncpa [#allocation6], 1
    %s391 = scalar_lea.sflag [#allocation6], 1
    %392 = vsyncpa %s391, 1
    %393 = vsyncpa [#allocation4], 1
    %s394 = scalar_lea.sflag [#allocation4], 1
    %395 = vsyncpa %s394, 1
    %396 = vsyncpa [#allocation9], 1
    %s397 = scalar_lea.sflag [#allocation9], 1
    %398 = vsyncpa %s397, 1

</llo_original>
